<compile_context>
chip_gen: v6e
topology: v6e:2x2x1
jax: 0.10.0
libtpu: 0.0.40
codegen_flags: <defaults>
</compile_context>

<pallas_src>
import math

import jax
import jax.numpy as jnp
from jax.experimental import pallas as pl
from jax.experimental.pallas import tpu as pltpu


def _round_up(v, m):
    return ((v + m - 1) // m) * m


def _cdiv(a, b):
    return (a + b - 1) // b


# -----------------------------------------------------------------------------
# Kernels
# -----------------------------------------------------------------------------
def _gcn_folded_kernel(adj_ref, h_ref, b_ref, o_ref):
    """h = x @ W pre-folded. K-tiled: accumulate straight into the resident
    f32 output block (bias folded into the k==0 init); no scratch."""
    @pl.when(pl.program_id(1) == 0)
    def _():
        o_ref[...] = jnp.zeros_like(o_ref) + b_ref[...]

    o_ref[...] += jnp.dot(adj_ref[...], h_ref[...],
                          preferred_element_type=jnp.float32)


def _gcn_folded_1d_kernel(adj_ref, h_ref, b_ref, o_ref):
    """h = x @ W pre-folded, full reduction in one block (1-D grid)."""
    o_ref[...] = (jnp.dot(adj_ref[...], h_ref[...],
                          preferred_element_type=jnp.float32)
                  + b_ref[...]).astype(o_ref.dtype)


def _gcn_postw_kernel(adj_ref, x_ref, w_ref, b_ref, o_ref, acc_ref):
    """acc = sum_k adj[i,k] @ x[k];  out = acc @ W + bias on the last k."""
    k = pl.program_id(1)

    @pl.when(k == 0)
    def _():
        acc_ref[...] = jnp.zeros_like(acc_ref)

    acc_ref[...] += jnp.dot(adj_ref[...], x_ref[...],
                            preferred_element_type=jnp.float32)

    @pl.when(k == pl.num_programs(1) - 1)
    def _():
        o_ref[...] = (jnp.dot(acc_ref[...], w_ref[...],
                              preferred_element_type=jnp.float32)
                      + b_ref[...]).astype(o_ref.dtype)


def _gcn_postw_1d_kernel(adj_ref, x_ref, w_ref, b_ref, o_ref):
    """Post-W path with the full reduction in one block (1-D grid)."""
    acc = jnp.dot(adj_ref[...], x_ref[...], preferred_element_type=jnp.float32)
    o_ref[...] = (jnp.dot(acc, w_ref[...], preferred_element_type=jnp.float32)
                  + b_ref[...]).astype(o_ref.dtype)


# -----------------------------------------------------------------------------
# Generation-aware VMEM budget & tile selection
# -----------------------------------------------------------------------------
def _vmem_capacity_bytes():
    """Physical VMEM per TensorCore (128 MiB on v5e/v6e, 64 MiB on v7x)."""
    try:
        info = pltpu.get_tpu_info()
        for attr in ("vmem_capacity_bytes", "vmem_size_bytes", "vmem_bytes"):
            v = getattr(info, attr, None)
            if v:
                return int(v)
    except Exception:
        pass
    try:
        kind = jax.devices()[0].device_kind.lower()
        if "v7" in kind:
            return 64 * 1024 * 1024
        return 128 * 1024 * 1024
    except Exception:
        return 64 * 1024 * 1024  # conservative fallback


def _vmem_budget_and_limit():
    cap = _vmem_capacity_bytes()
    budget = (42 * cap) // 100                         # tile-picker budget
    limit = min((75 * cap) // 100, cap - 8 * 1024 * 1024)
    return budget, limit


def _select_tiles(n, acc_width, f_out_pad, feat_itemsize, *,
                  w_resident_bytes, needs_acc_scratch, budget):
    """Returns (tm, tk, full_k)."""
    TM_CAP = 1024   # h is re-streamed once per row tile -> keep row tiles big
    TK_CAP = 2048   # big k tiles amortize the ~0.35us/grid-step overhead

    def usage(tm_, tk_):
        adj = 2 * tm_ * tk_ * feat_itemsize            # double-buffered adj tile
        feat = 2 * tk_ * acc_width * feat_itemsize     # double-buffered h tile
        out = 2 * tm_ * f_out_pad * 4                  # double-buffered out tile
        b = 2 * f_out_pad * 4                          # bias row
        acc = tm_ * acc_width * 4 if needs_acc_scratch else 0
        return adj + feat + out + b + acc + w_resident_bytes

    # Row tile (multiple of 16).  Only force a >= 2-way split (so the "parallel"
    # row axis can shard across v7x's two TensorCores) when the resulting row
    # tile still fills a 256-wide MXU.
    n_row_tiles = max(1, _cdiv(n, TM_CAP))
    if n_row_tiles == 1 and _round_up(_cdiv(n, 2), 16) >= 256:
        n_row_tiles = 2
    tm = _round_up(_cdiv(n, n_row_tiles), 16)

    # K tile (multiple of 128): prefer covering the whole reduction so the k
    # grid axis disappears entirely.
    n_pad128 = _round_up(n, 128)
    if usage(tm, n_pad128) <= budget:
        tk = n_pad128
    else:
        n_k_tiles = max(1, _cdiv(n, TK_CAP))
        tk = _round_up(_cdiv(n, n_k_tiles), 128)

    # Clamp to the VMEM budget: shrink tk first, then tm.
    while usage(tm, tk) > budget and tk > 128:
        tk = max(128, (tk // 2) // 128 * 128)
    while usage(tm, tk) > budget and tm > 16:
        tm = max(16, (tm // 2) // 16 * 16)

    full_k = tk >= n_pad128
    return tm, tk, full_k


# -----------------------------------------------------------------------------
# Wrapper
# -----------------------------------------------------------------------------
def graph_convolution(x, adj, weight, bias=None, *,
                      compute_dtype=jnp.bfloat16, _force_tiles=None):
    """Pallas implementation of GraphConvolution.forward: adj @ x @ W (+ bias).

    compute_dtype controls the dtype of the HBM-dominant adj / feature streams
    (accumulation is always f32).  bf16 (default) ~halves adj HBM traffic and
    doubles MXU rate on v6e/v7x; pass jnp.float32 for exact f32 streaming.
    """
    N, f_in = x.shape
    f_out = weight.shape[1]
    assert adj.shape == (N, N)
    assert weight.shape == (f_in, f_out)

    out_dtype = jnp.float32
    feat_dtype = jnp.dtype(compute_dtype)
    feat_itemsize = feat_dtype.itemsize

    f_in_pad = _round_up(f_in, 128)
    f_out_pad = _round_up(f_out, 128)

    # Contract the N^2-scale matmul against the narrower feature width.
    fold_w_first = f_out_pad <= f_in_pad
    acc_width = f_out_pad if fold_w_first else f_in_pad

    budget, vmem_limit = _vmem_budget_and_limit()
    w_resident = 0 if fold_w_first else 2 * f_in_pad * f_out_pad * 4
    tm, tk, full_k = _select_tiles(
        N, acc_width, f_out_pad, feat_itemsize,
        w_resident_bytes=w_resident, needs_acc_scratch=not fold_w_first,
        budget=budget)
    if _force_tiles is not None:                 # testing hook
        tm, tk = _force_tiles
        full_k = tk >= N

    n_rows_pad = _round_up(N, tm)
    n_k_pad = _round_up(N, tk)
    grid_rows = n_rows_pad // tm
    grid_k = n_k_pad // tk

    # adj: single cast (+ pad) pass in the streaming dtype, no f32 round-trip.
    # No copy at all when adj already matches feat_dtype and N is tile-aligned.
    adj_p = adj if adj.dtype == feat_dtype else adj.astype(feat_dtype)
    if n_rows_pad != N or n_k_pad != N:
        adj_p = jnp.pad(adj_p, ((0, n_rows_pad - N), (0, n_k_pad - N)))

    if fold_w_first:
        # Tiny pre-fold O(N*f_in*f_out); the heavy adj matmul then contracts
        # against the narrower width f_out_pad.
        h = jnp.dot(x.astype(jnp.float32), weight.astype(jnp.float32),
                    preferred_element_type=jnp.float32).astype(feat_dtype)
        h_p = jnp.pad(h, ((0, n_k_pad - N), (0, acc_width - f_out)))
    else:
        h_p = jnp.pad(x.astype(feat_dtype),
                      ((0, n_k_pad - N), (0, acc_width - f_in)))

    # Lane-dense bias row (zeros when the module has no bias -> same semantics).
    b_row = jnp.zeros((1, f_out_pad), jnp.float32)
    if bias is not None:
        b_row = b_row.at[0, :f_out].set(bias.astype(jnp.float32))

    if full_k:
        grid = (grid_rows,)
        dims = ("parallel",)
        adj_spec = pl.BlockSpec((tm, tk), lambda i: (i, 0))
        h_spec = pl.BlockSpec((tk, acc_width), lambda i: (0, 0))
        b_spec = pl.BlockSpec((1, f_out_pad), lambda i: (0, 0))
        w_spec = pl.BlockSpec((f_in_pad, f_out_pad), lambda i: (0, 0))
        out_spec = pl.BlockSpec((tm, f_out_pad), lambda i: (i, 0))
        scratch = []
        kernel = _gcn_folded_1d_kernel if fold_w_first else _gcn_postw_1d_kernel
    else:
        grid = (grid_rows, grid_k)
        dims = ("parallel", "arbitrary")
        adj_spec = pl.BlockSpec((tm, tk), lambda i, k: (i, k))
        h_spec = pl.BlockSpec((tk, acc_width), lambda i, k: (k, 0))
        b_spec = pl.BlockSpec((1, f_out_pad), lambda i, k: (0, 0))
        w_spec = pl.BlockSpec((f_in_pad, f_out_pad), lambda i, k: (0, 0))
        out_spec = pl.BlockSpec((tm, f_out_pad), lambda i, k: (i, 0))
        scratch = ([] if fold_w_first
                   else [pltpu.VMEM((tm, acc_width), jnp.float32)])
        kernel = _gcn_folded_kernel if fold_w_first else _gcn_postw_kernel

    flops = 2 * n_rows_pad * n_k_pad * acc_width
    bytes_accessed = (adj_p.size * feat_itemsize
                      + h_p.size * feat_itemsize * grid_rows   # h re-streamed
                      + n_rows_pad * f_out_pad * 4
                      + b_row.size * 4)

    if fold_w_first:
        in_specs = [adj_spec, h_spec, b_spec]
        args = (adj_p, h_p, b_row)
    else:
        w_p = jnp.pad(weight.astype(jnp.float32),
                      ((0, f_in_pad - f_in), (0, f_out_pad - f_out)))
        in_specs = [adj_spec, h_spec, w_spec, b_spec]
        args = (adj_p, h_p, w_p, b_row)
        flops += 2 * n_rows_pad * f_in_pad * f_out_pad
        bytes_accessed += w_p.size * 4

    out_padded = pl.pallas_call(
        kernel,
        out_shape=jax.ShapeDtypeStruct((n_rows_pad, f_out_pad), out_dtype),
        grid_spec=pltpu.PrefetchScalarGridSpec(
            num_scalar_prefetch=0,
            grid=grid,
            in_specs=in_specs,
            out_specs=out_spec,
            scratch_shapes=scratch,
        ),
        compiler_params=pltpu.CompilerParams(
            dimension_semantics=dims,
            vmem_limit_bytes=int(vmem_limit),
        ),
        cost_estimate=pl.CostEstimate(
            flops=int(flops),
            transcendentals=0,
            bytes_accessed=int(bytes_accessed)),
    )(*args)

    return out_padded[:N, :f_out]


def init_params(key, num_in, num_out, bias=False):
    """Deterministic init mirroring the PyTorch module.

    nn.init.kaiming_normal_(weight, mode='fan_in') on a (num_in, num_out)
    tensor uses fan_in = weight.size(1) = num_out (PyTorch 2-D fan rule),
    gain = sqrt(2).
    """
    kw, kb = jax.random.split(key)
    fan_in = num_out
    std = math.sqrt(2.0 / fan_in)
    weight = std * jax.random.normal(kw, (num_in, num_out), dtype=jnp.float32)
    b = None
    if bias:
        b = jax.random.uniform(kb, (num_out,), dtype=jnp.float32)
    return weight, b


if __name__ == "__main__":
    key = jax.random.PRNGKey(0)
    ks = jax.random.split(key, 8)

    # Case 1: module defaults (bias=False), folded-W path.
    N, num_in, num_out = 128, 32, 64
    x = jax.random.normal(ks[0], (N, num_in), dtype=jnp.float32)
    adj = jax.random.uniform(ks[1], (N, N), dtype=jnp.float32)
    weight, _ = init_params(ks[2], num_in, num_out, bias=False)
    ref = (adj @ x) @ weight

    out = jax.block_until_ready(graph_convolution(x, adj, weight))  # bf16 default
    assert out.shape == (N, num_out)
    assert jnp.allclose(out, ref, atol=0.5, rtol=5e-2), "bf16 fast path mismatch"

    out_f32 = jax.block_until_ready(
        graph_convolution(x, adj, weight, compute_dtype=jnp.float32))
    assert jnp.allclose(out_f32, ref, atol=1e-2, rtol=1e-3), "f32 path mismatch"

    # Case 2: bias=True.
    weight_b, bias_b = init_params(ks[3], num_in, num_out, bias=True)
    ref_b = (adj @ x) @ weight_b + bias_b
    out_b = jax.block_until_ready(
        graph_convolution(x, adj, weight_b, bias_b, compute_dtype=jnp.float32))
    assert jnp.allclose(out_b, ref_b, atol=1e-2, rtol=1e-3), "bias path mismatch"

    # Case 3: f_out > f_in (post-W kernel) + N not lane-aligned (padding path).
    N3, fi3, fo3 = 96, 48, 160
    x3 = jax.random.normal(ks[4], (N3, fi3), dtype=jnp.float32)
    adj3 = jax.random.uniform(ks[5], (N3, N3), dtype=jnp.float32)
    w3, b3 = init_params(ks[6], fi3, fo3, bias=True)
    ref3 = (adj3 @ x3) @ w3 + b3
    out3 = jax.block_until_ready(
        graph_convolution(x3, adj3, w3, b3, compute_dtype=jnp.float32))
    assert out3.shape == (N3, fo3)
    assert jnp.allclose(out3, ref3, atol=1e-2, rtol=1e-3), "post-W path mismatch"

    # Case 4: force multiple k tiles to exercise the K-tiled (accumulating)
    # kernels on both paths.
    N4 = 256
    adj4 = jax.random.uniform(ks[1], (N4, N4), dtype=jnp.float32)
    x4 = jax.random.normal(ks[7], (N4, num_in), dtype=jnp.float32)
    ref4 = (adj4 @ x4) @ weight
    out4 = jax.block_until_ready(
        graph_convolution(x4, adj4, weight, compute_dtype=jnp.float32,
                          _force_tiles=(128, 128)))
    assert jnp.allclose(out4, ref4, atol=5e-2, rtol=5e-3), "k-tiled folded mismatch"

    x5 = jax.random.normal(ks[4], (N4, fi3), dtype=jnp.float32)
    ref5 = (adj4 @ x5) @ w3 + b3
    out5 = jax.block_until_ready(
        graph_convolution(x5, adj4, w3, b3, compute_dtype=jnp.float32,
                          _force_tiles=(128, 128)))
    assert jnp.allclose(out5, ref5, atol=5e-2, rtol=5e-3), "k-tiled post-W mismatch"

    print("KERNEL_OK")
</pallas_src>

<mosaic_0001>
module attributes {stable_mosaic.version = 11 : i64} {
  func.func @_gcn_folded_1d_kernel(%arg0: i32, %arg1: memref<128x128xbf16, #tpu.memory_space<vmem>>, %arg2: memref<128x128xbf16, #tpu.memory_space<vmem>>, %arg3: memref<1x128xf32, #tpu.memory_space<vmem>>, %arg4: memref<128x128xf32, #tpu.memory_space<vmem>>) attributes {dimension_semantics = [#tpu.dimension_semantics<parallel>], iteration_bounds = array<i64: 1>, scalar_prefetch = 0 : i64, scratch_operands = 0 : i64, tpu.core_type = #tpu.core_type<tc>, window_params = [{transform_indices = @transform_0, window_bounds = array<i64: 128, 128>}, {pipeline_mode = #tpu.pipeline_mode<synchronous>, transform_indices = @transform_1, window_bounds = array<i64: 128, 128>}, {pipeline_mode = #tpu.pipeline_mode<synchronous>, transform_indices = @transform_2, window_bounds = array<i64: 1, 128>}, {transform_indices = @transform_3, window_bounds = array<i64: 128, 128>}]} {
    %c0 = arith.constant 0 : index
    %c0_0 = arith.constant 0 : index
    %0 = vector.load %arg1[%c0, %c0_0] : memref<128x128xbf16, #tpu.memory_space<vmem>>, vector<128x128xbf16>
    %c0_1 = arith.constant 0 : index
    %c0_2 = arith.constant 0 : index
    %1 = vector.load %arg2[%c0_1, %c0_2] : memref<128x128xbf16, #tpu.memory_space<vmem>>, vector<128x128xbf16>
    %cst = arith.constant dense<0.000000e+00> : vector<128x128xf32>
    %2 = tpu.matmul %0, %1, %cst {dimension_numbers = #tpu.dot_dimension_numbers<[1], [0], [0], [1], [0, 0, 1, 1], [], []>} : vector<128x128xbf16>, vector<128x128xbf16>, vector<128x128xf32> -> vector<128x128xf32>
    %c0_3 = arith.constant 0 : index
    %c0_4 = arith.constant 0 : index
    %3 = vector.load %arg3[%c0_3, %c0_4] : memref<1x128xf32, #tpu.memory_space<vmem>>, vector<1x128xf32>
    %4 = vector.broadcast %3 : vector<1x128xf32> to vector<128x128xf32>
    %5 = arith.addf %2, %4 : vector<128x128xf32>
    %c0_5 = arith.constant 0 : index
    %c0_6 = arith.constant 0 : index
    %6 = vector.load %arg4[%c0_5, %c0_6] : memref<128x128xf32, #tpu.memory_space<vmem>>, vector<128x128xf32>
    tpu.vector_store %arg4[%c0_5, %c0_6], %5 {strides = array<i32>} : memref<128x128xf32, #tpu.memory_space<vmem>>, vector<128x128xf32>,
    return
  }
  func.func @transform_0(%arg0: i32) -> (i32, i32) {
    %c0_i32 = arith.constant 0 : i32
    %c0_i32_0 = arith.constant 0 : i32
    return %arg0, %c0_i32 : i32, i32
  }
  func.func @transform_1(%arg0: i32) -> (i32, i32) {
    %c0_i32 = arith.constant 0 : i32
    %c0_i32_0 = arith.constant 0 : i32
    %c0_i32_1 = arith.constant 0 : i32
    return %c0_i32, %c0_i32_0 : i32, i32
  }
  func.func @transform_2(%arg0: i32) -> (i32, i32) {
    %c0_i32 = arith.constant 0 : i32
    %c0_i32_0 = arith.constant 0 : i32
    %c0_i32_1 = arith.constant 0 : i32
    return %c0_i32, %c0_i32_0 : i32, i32
  }
  func.func @transform_3(%arg0: i32) -> (i32, i32) {
    %c0_i32 = arith.constant 0 : i32
    %c0_i32_0 = arith.constant 0 : i32
    return %arg0, %c0_i32 : i32, i32
  }
}

</mosaic_0001>

<llo_original>
// kernel: tpu_custom_call.1
$region0: #{tpu_custom_call.1}
  #allocation0 [shape = 'u32[]', space=smem, size = 0x4, offset = 0x4, fixed_abs, tag = 'smem constant byte address 0x4 - core index']
  #allocation1 [shape = 'u32[144,128]{1,0:T(1,128)}', space=vmem, size = 0x12000, scoped, tag = 'internal scratch']
  %s0 = inlined_call_operand.hbm [shape: bf16[128,128], index: 0, kind: input, shape index: {}]
  %s1 = inlined_call_operand.hbm [shape: bf16[128,128], index: 1, kind: input, shape index: {}]
  %s2 = inlined_call_operand.vmem [shape: f32[1,128], index: 2, kind: input, shape index: {}]
  %s3 = inlined_call_operand.hbm [shape: f32[128,128], index: 3, kind: output, shape index: {}]
  %s4 = sld [smem:[#allocation0]]
  $region30: #{tpu_custom_call.1} parent=0
    _
  %s6 = ssub.s32 1, %s4
  %s7 = scalar_select 0, %s6, %s4
  $region1: #{tpu_custom_call.1} parent=0
    #allocation2 [shape = 'u8[32768]{0}', space=vmem, size = 0x8000, scoped, tag = 'input window, operand 0, single buffered']
    #allocation3 [shape = 's32[1]{0}', space=sflag, size = 0x4, scoped, tag = 'scoped memory for tpu_custom_call.1']
    #allocation4 [shape = 's32[1]{0}', space=sflag, size = 0x4, scoped, tag = 'scoped memory for tpu_custom_call.1']
    #allocation5 [shape = 'u8[32768]{0}', space=vmem, size = 0x8000, scoped, tag = 'input window, operand 1, single buffered']
    #allocation6 [shape = 's32[1]{0}', space=sflag, size = 0x4, scoped, tag = 'scoped memory for tpu_custom_call.1']
    #allocation7 [shape = 'u8[65536]{0}', space=vmem, size = 0x10000, scoped, tag = 'output window, operand 0, single buffered']
    %8 = vsyncpa [#allocation3], 0
    %9 = vsyncpa [#allocation6], 0
    %10 = vsyncpa [#allocation4], 0
    // Predicated region
    $region2: #{tpu_custom_call.1} parent=1 // pred_check
      _
    $region3: #{tpu_custom_call.1} parent=1 // pred_check_branch
      %12 = sbr.rel (0) target = $region5
    $region4: #{tpu_custom_call.1} parent=1 // pred_region
      %s14 = ssub.s32 1024, 1024
      %15 = vsyncadd [#allocation3], %s14
      %s16 = sshll.u32 [#allocation2], 4
      %s17 = int_to_ptr.vmem [resolvable:$true] %s16
      %22 = dma.hbm_to_vmem [thread:$0]  %s0, 1024, %s17, [#allocation3], 64, 64, 4
    $region5: #{tpu_custom_call.1} parent=1 // pred_fallthru
      _
    // Predicated region
    $region6: #{tpu_custom_call.1} parent=1 // pred_check
      _
    $region7: #{tpu_custom_call.1} parent=1 // pred_check_branch
      %24 = sbr.rel (0) target = $region9
    $region8: #{tpu_custom_call.1} parent=1 // pred_region
      %s26 = ssub.s32 1024, 1024
      %27 = vsyncadd [#allocation6], %s26
      %s28 = sshll.u32 [#allocation5], 4
      %s29 = int_to_ptr.vmem [resolvable:$true] %s28
      %34 = dma.hbm_to_vmem [thread:$0]  %s1, 1024, %s29, [#allocation6], 64, 64, 4
    $region9: #{tpu_custom_call.1} parent=1 // pred_fallthru
      _
    // Predicated region
    $region10: #{tpu_custom_call.1} parent=1 // pred_check
      _
    $region11: #{tpu_custom_call.1} parent=1 // pred_check_branch
      %36 = sbr.rel (0) target = $region13
    $region12: #{tpu_custom_call.1} parent=1 // pred_region
      _
    $region13: #{tpu_custom_call.1} parent=1 // pred_fallthru
      _
    // Predicated region
    $region14: #{tpu_custom_call.1} parent=1 // pred_check
      _
    $region15: #{tpu_custom_call.1} parent=1 // pred_check_branch
      %38 = sbr.rel (0) target = $region17
    $region16: #{tpu_custom_call.1} parent=1 // pred_region
      %39 = dma.done [#allocation3], 1024
    $region17: #{tpu_custom_call.1} parent=1 // pred_fallthru
      _
    // Predicated region
    $region18: #{tpu_custom_call.1} parent=1 // pred_check
      _
    $region19: #{tpu_custom_call.1} parent=1 // pred_check_branch
      %41 = sbr.rel (0) target = $region21
    $region20: #{tpu_custom_call.1} parent=1 // pred_region
      %42 = dma.done [#allocation6], 1024
    $region21: #{tpu_custom_call.1} parent=1 // pred_fallthru
      _
    %v44 = vld [vmem:[#allocation2] sm:$0xf]
    %v45 = vld [vmem:[#allocation2 + $0x4] sm:$0xf]
    %v46 = vld [vmem:[#allocation2 + $0x8] sm:$0xf]
    %v47 = vld [vmem:[#allocation2 + $0xc] sm:$0xf]
    %v48 = vld [vmem:[#allocation2 + $0x10] sm:$0xf]
    %v49 = vld [vmem:[#allocation2 + $0x14] sm:$0xf]
    %v50 = vld [vmem:[#allocation2 + $0x18] sm:$0xf]
    %v51 = vld [vmem:[#allocation2 + $0x1c] sm:$0xf]
    %v52 = vld [vmem:[#allocation2 + $0x20] sm:$0xf]
    %v53 = vld [vmem:[#allocation2 + $0x24] sm:$0xf]
    %v54 = vld [vmem:[#allocation2 + $0x28] sm:$0xf]
    %v55 = vld [vmem:[#allocation2 + $0x2c] sm:$0xf]
    %v56 = vld [vmem:[#allocation2 + $0x30] sm:$0xf]
    %v57 = vld [vmem:[#allocation2 + $0x34] sm:$0xf]
    %v58 = vld [vmem:[#allocation2 + $0x38] sm:$0xf]
    %v59 = vld [vmem:[#allocation2 + $0x3c] sm:$0xf]
    %v60 = vld [vmem:[#allocation5] sm:$0xf]
    %v61 = vld [vmem:[#allocation5 + $0x4] sm:$0xf]
    %v62 = vld [vmem:[#allocation5 + $0x8] sm:$0xf]
    %v63 = vld [vmem:[#allocation5 + $0xc] sm:$0xf]
    %v64 = vld [vmem:[#allocation5 + $0x10] sm:$0xf]
    %v65 = vld [vmem:[#allocation5 + $0x14] sm:$0xf]
    %v66 = vld [vmem:[#allocation5 + $0x18] sm:$0xf]
    %v67 = vld [vmem:[#allocation5 + $0x1c] sm:$0xf]
    %v68 = vld [vmem:[#allocation5 + $0x20] sm:$0xf]
    %v69 = vld [vmem:[#allocation5 + $0x24] sm:$0xf]
    %v70 = vld [vmem:[#allocation5 + $0x28] sm:$0xf]
    %v71 = vld [vmem:[#allocation5 + $0x2c] sm:$0xf]
    %v72 = vld [vmem:[#allocation5 + $0x30] sm:$0xf]
    %v73 = vld [vmem:[#allocation5 + $0x34] sm:$0xf]
    %v74 = vld [vmem:[#allocation5 + $0x38] sm:$0xf]
    %v75 = vld [vmem:[#allocation5 + $0x3c] sm:$0xf]
    %v76 = vld [vmem:[%s2] sm:$0x1]
    %v78 = vlaneseq
    %v79 = vshrl.u32 %v78, 7
    %v80 = vsub.s32 0, %v79
    %v81 = vrot.slane %v76, %v80
    %v99 = vunpack.c.l.b16 %v44
    %v100 = vunpack.c.l.b16 %v45
    %v101 = vunpack.c.l.b16 %v46
    %v102 = vunpack.c.l.b16 %v47
    %v103 = vunpack.c.l.b16 %v48
    %v104 = vunpack.c.l.b16 %v49
    %v105 = vunpack.c.l.b16 %v50
    %v106 = vunpack.c.l.b16 %v51
    %v107 = vunpack.c.l.b16 %v52
    %v108 = vunpack.c.l.b16 %v53
    %v109 = vunpack.c.l.b16 %v54
    %v110 = vunpack.c.l.b16 %v55
    %v111 = vunpack.c.l.b16 %v56
    %v112 = vunpack.c.l.b16 %v57
    %v113 = vunpack.c.l.b16 %v58
    %v114 = vunpack.c.l.b16 %v59
    %v115 = vpack.c.b16 %v100, %v99
    %v116 = vpack.c.b16 %v102, %v101
    %v117 = vpack.c.b16 %v104, %v103
    %v118 = vpack.c.b16 %v106, %v105
    %v119 = vpack.c.b16 %v108, %v107
    %v120 = vpack.c.b16 %v110, %v109
    %v121 = vpack.c.b16 %v112, %v111
    %v122 = vpack.c.b16 %v114, %v113
    %v147 = vunpack.c.l.b16 %v60
    %v148 = vunpack.c.l.b16 %v61
    %v149 = vunpack.c.l.b16 %v62
    %v150 = vunpack.c.l.b16 %v63
    %v151 = vunpack.c.l.b16 %v64
    %v152 = vunpack.c.l.b16 %v65
    %v153 = vunpack.c.l.b16 %v66
    %v154 = vunpack.c.l.b16 %v67
    %v155 = vunpack.c.l.b16 %v68
    %v156 = vunpack.c.l.b16 %v69
    %v157 = vunpack.c.l.b16 %v70
    %v158 = vunpack.c.l.b16 %v71
    %v159 = vunpack.c.l.b16 %v72
    %v160 = vunpack.c.l.b16 %v73
    %v161 = vunpack.c.l.b16 %v74
    %v162 = vunpack.c.l.b16 %v75
    %v163 = vpack.c.b16 %v148, %v147
    %v164 = vpack.c.b16 %v150, %v149
    %v165 = vpack.c.b16 %v152, %v151
    %v166 = vpack.c.b16 %v154, %v153
    %v167 = vpack.c.b16 %v156, %v155
    %v168 = vpack.c.b16 %v158, %v157
    %v169 = vpack.c.b16 %v160, %v159
    %v170 = vpack.c.b16 %v162, %v161
    %179 = vmatprep.subr.bf16.mxu0 0
    %180 = vmatpush1.bf16.msra.mxu0 %v170
    %181 = vmatprep.subr.bf16.mxu0 0
    %182 = vmatpush1.bf16.msra.mxu0 %v169
    %183 = vmatprep.subr.bf16.mxu0 0
    %184 = vmatpush1.bf16.msra.mxu0 %v168
    %185 = vmatprep.subr.bf16.mxu0 0
    %186 = vmatpush1.bf16.msra.mxu0 %v167
    %187 = vmatprep.subr.bf16.mxu0 0
    %188 = vmatpush1.bf16.msra.mxu0 %v166
    %189 = vmatprep.subr.bf16.mxu0 0
    %190 = vmatpush1.bf16.msra.mxu0 %v165
    %191 = vmatprep.subr.bf16.mxu0 0
    %192 = vmatpush1.bf16.msra.mxu0 %v164
    %193 = vmatprep.subr.bf16.mxu0 0
    %194 = vmatpush1.bf16.msra.mxu0 %v163
    %195 = vmatprep.subr.bf16.mxu0 0
    %196 = vmatpush2.bf16.msra.mxu0 0
    %197 = vmatprep.subr.bf16.mxu0 0
    %198 = vmatpush2.bf16.msra.mxu0 0
    %199 = vmatprep.subr.bf16.mxu0 0
    %200 = vmatpush2.bf16.msra.mxu0 0
    %201 = vmatprep.subr.bf16.mxu0 0
    %202 = vmatpush2.bf16.msra.mxu0 0
    %203 = vmatprep.subr.bf16.mxu0 0
    %204 = vmatpush2.bf16.msra.mxu0 0
    %205 = vmatprep.subr.bf16.mxu0 0
    %206 = vmatpush2.bf16.msra.mxu0 0
    %207 = vmatprep.subr.bf16.mxu0 0
    %208 = vmatpush2.bf16.msra.mxu0 0
    %209 = vmatprep.subr.bf16.mxu0 0
    %210 = vmatpush2.bf16.msra.mxu0 0
    %211 = vmatprep.mubr.bf16.mxu0 0
    %212 = vmatmul.mubr.bf16.gmra.mxu0 %v115
    %v213 = vpop.f32.mrf.mxu0
    %v214 = vadd.f32 %v81, %v213
    %v215 = vpop.f32.mrf.mxu0
    %v216 = vpop.f32.mrf.mxu0
    %v217 = vadd.f32 %v81, %v216
    %v218 = vpop.f32.mrf.mxu0
    %219 = vmatprep.mubr.bf16.mxu0 0
    %220 = vmatmul.mubr.bf16.gmra.mxu0 %v116
    %v221 = vpop.f32.mrf.mxu0
    %v222 = vadd.f32 %v81, %v221
    %v223 = vpop.f32.mrf.mxu0
    %v224 = vpop.f32.mrf.mxu0
    %v225 = vadd.f32 %v81, %v224
    %v226 = vpop.f32.mrf.mxu0
    %227 = vmatprep.mubr.bf16.mxu0 0
    %228 = vmatmul.mubr.bf16.gmra.mxu0 %v117
    %v229 = vpop.f32.mrf.mxu0
    %v230 = vadd.f32 %v81, %v229
    %v231 = vpop.f32.mrf.mxu0
    %v232 = vpop.f32.mrf.mxu0
    %v233 = vadd.f32 %v81, %v232
    %v234 = vpop.f32.mrf.mxu0
    %235 = vmatprep.mubr.bf16.mxu0 0
    %236 = vmatmul.mubr.bf16.gmra.mxu0 %v118
    %v237 = vpop.f32.mrf.mxu0
    %v238 = vadd.f32 %v81, %v237
    %v239 = vpop.f32.mrf.mxu0
    %v240 = vpop.f32.mrf.mxu0
    %v241 = vadd.f32 %v81, %v240
    %v242 = vpop.f32.mrf.mxu0
    %243 = vmatprep.mubr.bf16.mxu0 0
    %244 = vmatmul.mubr.bf16.gmra.mxu0 %v119
    %v245 = vpop.f32.mrf.mxu0
    %v246 = vadd.f32 %v81, %v245
    %v247 = vpop.f32.mrf.mxu0
    %v248 = vpop.f32.mrf.mxu0
    %v249 = vadd.f32 %v81, %v248
    %v250 = vpop.f32.mrf.mxu0
    %251 = vmatprep.mubr.bf16.mxu0 0
    %252 = vmatmul.mubr.bf16.gmra.mxu0 %v120
    %v253 = vpop.f32.mrf.mxu0
    %v254 = vadd.f32 %v81, %v253
    %v255 = vpop.f32.mrf.mxu0
    %v256 = vpop.f32.mrf.mxu0
    %v257 = vadd.f32 %v81, %v256
    %v258 = vpop.f32.mrf.mxu0
    %259 = vmatprep.mubr.bf16.mxu0 0
    %260 = vmatmul.mubr.bf16.gmra.mxu0 %v121
    %v261 = vpop.f32.mrf.mxu0
    %v262 = vadd.f32 %v81, %v261
    %v263 = vpop.f32.mrf.mxu0
    %v264 = vpop.f32.mrf.mxu0
    %v265 = vadd.f32 %v81, %v264
    %v266 = vpop.f32.mrf.mxu0
    %267 = vmatprep.mubr.bf16.mxu0 0
    %268 = vmatmul.mubr.bf16.gmra.mxu0 %v122
    %v269 = vpop.f32.mrf.mxu0
    %v270 = vadd.f32 %v81, %v269
    %v271 = vpop.f32.mrf.mxu0
    %v272 = vpop.f32.mrf.mxu0
    %v273 = vadd.f32 %v81, %v272
    %v274 = vpop.f32.mrf.mxu0
    %275 = vdwg.mxu0
    %276 = vst [vmem:[#allocation7] sm:$0xff] %v214
    %277 = vst [vmem:[#allocation7 + $0x8] sm:$0xff] %v217
    %278 = vst [vmem:[#allocation7 + $0x10] sm:$0xff] %v222
    %279 = vst [vmem:[#allocation7 + $0x18] sm:$0xff] %v225
    %280 = vst [vmem:[#allocation7 + $0x20] sm:$0xff] %v230
    %281 = vst [vmem:[#allocation7 + $0x28] sm:$0xff] %v233
    %282 = vst [vmem:[#allocation7 + $0x30] sm:$0xff] %v238
    %283 = vst [vmem:[#allocation7 + $0x38] sm:$0xff] %v241
    %284 = vst [vmem:[#allocation7 + $0x40] sm:$0xff] %v246
    %285 = vst [vmem:[#allocation7 + $0x48] sm:$0xff] %v249
    %286 = vst [vmem:[#allocation7 + $0x50] sm:$0xff] %v254
    %287 = vst [vmem:[#allocation7 + $0x58] sm:$0xff] %v257
    %288 = vst [vmem:[#allocation7 + $0x60] sm:$0xff] %v262
    %289 = vst [vmem:[#allocation7 + $0x68] sm:$0xff] %v265
    %290 = vst [vmem:[#allocation7 + $0x70] sm:$0xff] %v270
    %291 = vst [vmem:[#allocation7 + $0x78] sm:$0xff] %v273
    // Predicated region
    $region22: #{tpu_custom_call.1} parent=1 // pred_check
      _
    $region23: #{tpu_custom_call.1} parent=1 // pred_check_branch
      %293 = sbr.rel (0) target = $region25
    $region24: #{tpu_custom_call.1} parent=1 // pred_region
      %s295 = ssub.s32 2048, 2048
      %296 = vsyncadd [#allocation4], %s295
      %s297 = sshll.u32 [#allocation7], 4
      %s298 = int_to_ptr.vmem [resolvable:$true] %s297
      %303 = dma.vmem_to_hbm [thread:$0]  %s298, 2048, %s3, [#allocation4], 128, 128, 8
    $region25: #{tpu_custom_call.1} parent=1 // pred_fallthru
      _
    // Predicated region
    $region26: #{tpu_custom_call.1} parent=1 // pred_check
      _
    $region27: #{tpu_custom_call.1} parent=1 // pred_check_branch
      %305 = sbr.rel (0) target = $region29
    $region28: #{tpu_custom_call.1} parent=1 // pred_region
      %306 = dma.done [#allocation4], 2048
    $region29: #{tpu_custom_call.1} parent=1 // pred_fallthru
      _
    %307 = vsyncpa [#allocation3], 1
    %308 = vsyncpa [#allocation6], 1
    %309 = vsyncpa [#allocation4], 1

</llo_original>
